<compile_context>
chip_gen: v5e
topology: v5e:2x2
jax: 0.10.0
libtpu: 0.0.40
codegen_flags: <defaults>
</compile_context>

<pallas_src>
import functools

import jax
import jax.numpy as jnp
from jax import lax
from jax.experimental import pallas as pl
from jax.experimental.pallas import tpu as pltpu

LN_EPS = 1e-5  # torch.nn.LayerNorm default


def _round_up(x, m):
    return ((x + m - 1) // m) * m


def _vmem_capacity_bytes():
    """Physical VMEM per TensorCore; conservative (v7x) fallback on failure."""
    try:
        info = pltpu.get_tpu_info()
        cap = int(getattr(info, "vmem_capacity_bytes", 0))
        if cap > 0:
            return cap
    except Exception:
        pass
    return 64 * 1024 * 1024


def _layernorm_affine(x_f32, g_ref, b_ref, d_true):
    """f32 LayerNorm statistics + affine over the true feature width.

    Padding columns of x are zero, so the sum-based mean and E[x^2] are
    already correct; the E[x^2] - mean^2 variance form needs no masking of
    padded columns (they are additionally killed by zero-padded gamma/beta
    and zero-padded weight rows).
    """
    inv_d = jnp.float32(1.0 / d_true)
    mean = jnp.sum(x_f32, axis=-1, keepdims=True) * inv_d
    ex2 = jnp.sum(x_f32 * x_f32, axis=-1, keepdims=True) * inv_d
    var = ex2 - mean * mean
    xn = (x_f32 - mean) * lax.rsqrt(var + LN_EPS)
    return xn * g_ref[...].astype(jnp.float32) + b_ref[...].astype(jnp.float32)


def _prenorm_kernel_resident(x_ref, g_ref, b_ref, w_ref, bias_ref, o_ref, *, d_true):
    # Whole (padded) weight resident in VMEM; 1-D grid over row tiles.
    y = _layernorm_affine(x_ref[...].astype(jnp.float32), g_ref, b_ref, d_true)
    out = jnp.dot(y.astype(w_ref.dtype), w_ref[...],
                  preferred_element_type=jnp.float32)
    o_ref[...] = (out + bias_ref[...].astype(jnp.float32)).astype(o_ref.dtype)


def _prenorm_kernel_tiled(x_ref, g_ref, b_ref, w_ref, bias_ref, o_ref, xn_ref,
                          *, d_true):
    # LayerNorm (+ affine) is computed once per row tile (j == 0) and cached
    # in VMEM scratch; every D_out tile of the same row tile reuses it.
    @pl.when(pl.program_id(1) == 0)
    def _():
        y = _layernorm_affine(x_ref[...].astype(jnp.float32), g_ref, b_ref, d_true)
        xn_ref[...] = y.astype(xn_ref.dtype)

    out = jnp.dot(xn_ref[...], w_ref[...], preferred_element_type=jnp.float32)
    o_ref[...] = (out + bias_ref[...].astype(jnp.float32)).astype(o_ref.dtype)


def prenorm(x, gamma, beta, w, bias, *, max_resident_w_bytes=None):
    """fn(LayerNorm(x)) with fn = Linear(D, D_out).

    x: (B, N, D); gamma/beta: (D,); w: (D, D_out); bias: (D_out,).
    """
    B, N, D = x.shape
    D_out = w.shape[1]
    M = B * N

    x_bytes = jnp.dtype(x.dtype).itemsize
    w_bytes = jnp.dtype(w.dtype).itemsize
    o_bytes = x_bytes
    sub = 16 if x_bytes < 4 else 8           # sublane-friendly row alignment

    D_pad = _round_up(D, 128)
    D_out_pad = _round_up(D_out, 128)

    # Per-generation VMEM budgets (v5e/v6e: 128 MiB physical, v7x: 64 MiB).
    cap = _vmem_capacity_bytes()
    vmem_limit = min(int(cap * 0.85), 112 * 1024 * 1024)
    budget = min(int(cap * 0.60), 80 * 1024 * 1024)
    if max_resident_w_bytes is None:
        max_resident_w_bytes = budget // 3

    # Decide whether the whole folded/padded weight can live in VMEM
    # (double-buffer-conservative accounting).
    w_res_bytes = 2 * D_pad * D_out_pad * w_bytes
    resident = w_res_bytes <= max_resident_w_bytes

    if resident:
        tn = D_out_pad
        per_row = 2 * D_pad * x_bytes + 2 * tn * o_bytes + 3 * D_pad * 4
        tm = (budget - w_res_bytes) // per_row
    else:
        tn = 128
        for cand in (256, 512):
            if D_out_pad % cand == 0 and 2 * D_pad * cand * w_bytes <= budget // 3:
                tn = cand
        per_row = (2 * D_pad * x_bytes          # x double buffer
                   + 2 * tn * o_bytes           # out double buffer
                   + D_pad * w_bytes            # xn VMEM scratch
                   + 3 * D_pad * 4)             # f32 LN temporaries
        tm = (budget - 2 * D_pad * tn * w_bytes) // per_row
    tm = int(max(sub, min(1024, (tm // sub) * sub)))
    tm = min(tm, _round_up(M, sub))
    M_pad = _round_up(M, tm)

    # Pad only when actually needed (each pad/slice is a full HBM pass).
    x2 = x.reshape(M, D)
    if M_pad != M or D_pad != D:
        x2 = jnp.pad(x2, ((0, M_pad - M), (0, D_pad - D)))
    g2 = gamma.reshape(1, D)
    b2 = beta.reshape(1, D)
    if D_pad != D:
        g2 = jnp.pad(g2, ((0, 0), (0, D_pad - D)))
        b2 = jnp.pad(b2, ((0, 0), (0, D_pad - D)))
    w2 = w
    if D_pad != D or D_out_pad != D_out:
        w2 = jnp.pad(w2, ((0, D_pad - D), (0, D_out_pad - D_out)))
    bias2 = bias.reshape(1, D_out)
    if D_out_pad != D_out:
        bias2 = jnp.pad(bias2, ((0, 0), (0, D_out_pad - D_out)))

    if resident:
        kernel = functools.partial(_prenorm_kernel_resident, d_true=D)
        grid = (M_pad // tm,)
        in_specs = [
            pl.BlockSpec((tm, D_pad), lambda i: (i, 0)),          # x rows
            pl.BlockSpec((1, D_pad), lambda i: (0, 0)),           # gamma
            pl.BlockSpec((1, D_pad), lambda i: (0, 0)),           # beta
            pl.BlockSpec((D_pad, D_out_pad), lambda i: (0, 0)),   # W (resident)
            pl.BlockSpec((1, D_out_pad), lambda i: (0, 0)),       # bias
        ]
        out_specs = pl.BlockSpec((tm, D_out_pad), lambda i: (i, 0))
        scratch_shapes = []
        dim_sem = ("parallel",)
    else:
        kernel = functools.partial(_prenorm_kernel_tiled, d_true=D)
        grid = (M_pad // tm, D_out_pad // tn)
        in_specs = [
            pl.BlockSpec((tm, D_pad), lambda i, j: (i, 0)),       # x rows
            pl.BlockSpec((1, D_pad), lambda i, j: (0, 0)),        # gamma
            pl.BlockSpec((1, D_pad), lambda i, j: (0, 0)),        # beta
            pl.BlockSpec((D_pad, tn), lambda i, j: (0, j)),       # W tile
            pl.BlockSpec((1, tn), lambda i, j: (0, j)),           # bias tile
        ]
        out_specs = pl.BlockSpec((tm, tn), lambda i, j: (i, j))
        scratch_shapes = [pltpu.VMEM((tm, D_pad), w.dtype)]       # cached xn
        dim_sem = ("parallel", "arbitrary")

    out2 = pl.pallas_call(
        kernel,
        out_shape=jax.ShapeDtypeStruct((M_pad, D_out_pad), x.dtype),
        grid_spec=pltpu.PrefetchScalarGridSpec(
            num_scalar_prefetch=0,
            grid=grid,
            in_specs=in_specs,
            out_specs=out_specs,
            scratch_shapes=scratch_shapes,
        ),
        compiler_params=pltpu.CompilerParams(
            dimension_semantics=dim_sem,
            vmem_limit_bytes=vmem_limit,
        ),
    )(x2, g2, b2, w2, bias2)

    if M_pad != M or D_out_pad != D_out:
        out2 = out2[:M, :D_out]
    return out2.reshape(B, N, D_out)


def prenorm_ref(x, gamma, beta, w, bias):
    xf = x.astype(jnp.float32)
    mean = jnp.mean(xf, axis=-1, keepdims=True)
    var = jnp.mean((xf - mean) ** 2, axis=-1, keepdims=True)
    xn = (xf - mean) * lax.rsqrt(var + LN_EPS)
    y = xn * gamma.astype(jnp.float32) + beta.astype(jnp.float32)
    return (y @ w.astype(jnp.float32) + bias.astype(jnp.float32)).astype(x.dtype)


if __name__ == "__main__":
    key = jax.random.PRNGKey(0)
    B, N, D = 2, 8, 32          # batch=2, seq=8, hidden dim=32
    D_out = 32

    kx, kg, kb, kw, kbias = jax.random.split(key, 5)
    x = jax.random.normal(kx, (B, N, D), dtype=jnp.float32)
    # LayerNorm params (torch init: weight=1, bias=0; perturb slightly so the
    # affine part is actually exercised, still deterministic).
    gamma = 1.0 + 0.1 * jax.random.normal(kg, (D,), dtype=jnp.float32)
    beta = 0.1 * jax.random.normal(kb, (D,), dtype=jnp.float32)
    # fn = Linear(D, D_out) params.
    w = jax.random.normal(kw, (D, D_out), dtype=jnp.float32) / jnp.sqrt(D)
    bias = 0.1 * jax.random.normal(kbias, (D_out,), dtype=jnp.float32)

    # Path 1: weight-resident (typical ViT sizes).
    out = jax.block_until_ready(prenorm(x, gamma, beta, w, bias))
    ref = prenorm_ref(x, gamma, beta, w, bias)
    assert out.shape == (B, N, D_out)
    assert jnp.allclose(out, ref, atol=2e-4, rtol=2e-4), "mismatch vs reference"

    # Path 2: tiled weight with the cached-xn VMEM scratch (forced by a tiny
    # residency budget so the D_out grid axis is > 1).
    D_out2 = 1024
    kw2, kbias2 = jax.random.split(kw)
    w2 = jax.random.normal(kw2, (D, D_out2), dtype=jnp.float32) / jnp.sqrt(D)
    bias2 = 0.1 * jax.random.normal(kbias2, (D_out2,), dtype=jnp.float32)
    out2 = jax.block_until_ready(
        prenorm(x, gamma, beta, w2, bias2, max_resident_w_bytes=0))
    ref2 = prenorm_ref(x, gamma, beta, w2, bias2)
    assert out2.shape == (B, N, D_out2)
    assert jnp.allclose(out2, ref2, atol=2e-4, rtol=2e-4), "mismatch vs reference (tiled)"

    print("KERNEL_OK")
</pallas_src>

<mosaic_0001>
module attributes {stable_mosaic.version = 11 : i64} {
  func.func @_prenorm_kernel_resident(%arg0: i32, %arg1: memref<16x128xf32, #tpu.memory_space<vmem>>, %arg2: memref<1x128xf32, #tpu.memory_space<vmem>>, %arg3: memref<1x128xf32, #tpu.memory_space<vmem>>, %arg4: memref<128x128xf32, #tpu.memory_space<vmem>>, %arg5: memref<1x128xf32, #tpu.memory_space<vmem>>, %arg6: memref<16x128xf32, #tpu.memory_space<vmem>>) attributes {dimension_semantics = [#tpu.dimension_semantics<parallel>], iteration_bounds = array<i64: 1>, scalar_prefetch = 0 : i64, scratch_operands = 0 : i64, tpu.core_type = #tpu.core_type<tc>, window_params = [{transform_indices = @transform_0, window_bounds = array<i64: 16, 128>}, {pipeline_mode = #tpu.pipeline_mode<synchronous>, transform_indices = @transform_1, window_bounds = array<i64: 1, 128>}, {pipeline_mode = #tpu.pipeline_mode<synchronous>, transform_indices = @transform_2, window_bounds = array<i64: 1, 128>}, {pipeline_mode = #tpu.pipeline_mode<synchronous>, transform_indices = @transform_3, window_bounds = array<i64: 128, 128>}, {pipeline_mode = #tpu.pipeline_mode<synchronous>, transform_indices = @transform_4, window_bounds = array<i64: 1, 128>}, {transform_indices = @transform_5, window_bounds = array<i64: 16, 128>}]} {
    %c0 = arith.constant 0 : index
    %c0_0 = arith.constant 0 : index
    %0 = vector.load %arg1[%c0, %c0_0] : memref<16x128xf32, #tpu.memory_space<vmem>>, vector<16x128xf32>
    %cst = arith.constant dense<0.000000e+00> : vector<16xf32>
    %1 = vector.multi_reduction <add>, %0, %cst [1] : vector<16x128xf32> to vector<16xf32>
    %2 = vector.shape_cast %1 : vector<16xf32> to vector<16x1xf32>
    %cst_1 = arith.constant 3.125000e-02 : f32
    %3 = vector.broadcast %cst_1 : f32 to vector<16x1xf32>
    %4 = arith.mulf %2, %3 : vector<16x1xf32>
    %5 = arith.mulf %0, %0 : vector<16x128xf32>
    %cst_2 = arith.constant dense<0.000000e+00> : vector<16xf32>
    %6 = vector.multi_reduction <add>, %5, %cst_2 [1] : vector<16x128xf32> to vector<16xf32>
    %7 = vector.shape_cast %6 : vector<16xf32> to vector<16x1xf32>
    %cst_3 = arith.constant 3.125000e-02 : f32
    %8 = vector.broadcast %cst_3 : f32 to vector<16x1xf32>
    %9 = arith.mulf %7, %8 : vector<16x1xf32>
    %10 = arith.mulf %4, %4 : vector<16x1xf32>
    %11 = arith.subf %9, %10 : vector<16x1xf32>
    %12 = vector.broadcast %4 : vector<16x1xf32> to vector<16x128xf32>
    %13 = arith.subf %0, %12 : vector<16x128xf32>
    %cst_4 = arith.constant 9.99999974E-6 : f32
    %14 = vector.broadcast %cst_4 : f32 to vector<16x1xf32>
    %15 = arith.addf %11, %14 : vector<16x1xf32>
    %16 = math.rsqrt %15 : vector<16x1xf32>
    %17 = vector.broadcast %16 : vector<16x1xf32> to vector<16x128xf32>
    %18 = arith.mulf %13, %17 : vector<16x128xf32>
    %c0_5 = arith.constant 0 : index
    %c0_6 = arith.constant 0 : index
    %19 = vector.load %arg2[%c0_5, %c0_6] : memref<1x128xf32, #tpu.memory_space<vmem>>, vector<1x128xf32>
    %20 = vector.broadcast %19 : vector<1x128xf32> to vector<16x128xf32>
    %21 = arith.mulf %18, %20 : vector<16x128xf32>
    %c0_7 = arith.constant 0 : index
    %c0_8 = arith.constant 0 : index
    %22 = vector.load %arg3[%c0_7, %c0_8] : memref<1x128xf32, #tpu.memory_space<vmem>>, vector<1x128xf32>
    %23 = vector.broadcast %22 : vector<1x128xf32> to vector<16x128xf32>
    %24 = arith.addf %21, %23 : vector<16x128xf32>
    %c0_9 = arith.constant 0 : index
    %c0_10 = arith.constant 0 : index
    %25 = vector.load %arg4[%c0_9, %c0_10] : memref<128x128xf32, #tpu.memory_space<vmem>>, vector<128x128xf32>
    %cst_11 = arith.constant dense<0.000000e+00> : vector<16x128xf32>
    %26 = tpu.matmul %24, %25, %cst_11 {dimension_numbers = #tpu.dot_dimension_numbers<[1], [0], [0], [1], [0, 0, 1, 1], [], []>} : vector<16x128xf32>, vector<128x128xf32>, vector<16x128xf32> -> vector<16x128xf32>
    %c0_12 = arith.constant 0 : index
    %c0_13 = arith.constant 0 : index
    %27 = vector.load %arg5[%c0_12, %c0_13] : memref<1x128xf32, #tpu.memory_space<vmem>>, vector<1x128xf32>
    %28 = vector.broadcast %27 : vector<1x128xf32> to vector<16x128xf32>
    %29 = arith.addf %26, %28 : vector<16x128xf32>
    %c0_14 = arith.constant 0 : index
    %c0_15 = arith.constant 0 : index
    %30 = vector.load %arg6[%c0_14, %c0_15] : memref<16x128xf32, #tpu.memory_space<vmem>>, vector<16x128xf32>
    tpu.vector_store %arg6[%c0_14, %c0_15], %29 {strides = array<i32>} : memref<16x128xf32, #tpu.memory_space<vmem>>, vector<16x128xf32>,
    return
  }
  func.func @transform_0(%arg0: i32) -> (i32, i32) {
    %c0_i32 = arith.constant 0 : i32
    %c0_i32_0 = arith.constant 0 : i32
    return %arg0, %c0_i32 : i32, i32
  }
  func.func @transform_1(%arg0: i32) -> (i32, i32) {
    %c0_i32 = arith.constant 0 : i32
    %c0_i32_0 = arith.constant 0 : i32
    %c0_i32_1 = arith.constant 0 : i32
    return %c0_i32, %c0_i32_0 : i32, i32
  }
  func.func @transform_2(%arg0: i32) -> (i32, i32) {
    %c0_i32 = arith.constant 0 : i32
    %c0_i32_0 = arith.constant 0 : i32
    %c0_i32_1 = arith.constant 0 : i32
    return %c0_i32, %c0_i32_0 : i32, i32
  }
  func.func @transform_3(%arg0: i32) -> (i32, i32) {
    %c0_i32 = arith.constant 0 : i32
    %c0_i32_0 = arith.constant 0 : i32
    %c0_i32_1 = arith.constant 0 : i32
    return %c0_i32, %c0_i32_0 : i32, i32
  }
  func.func @transform_4(%arg0: i32) -> (i32, i32) {
    %c0_i32 = arith.constant 0 : i32
    %c0_i32_0 = arith.constant 0 : i32
    %c0_i32_1 = arith.constant 0 : i32
    return %c0_i32, %c0_i32_0 : i32, i32
  }
  func.func @transform_5(%arg0: i32) -> (i32, i32) {
    %c0_i32 = arith.constant 0 : i32
    %c0_i32_0 = arith.constant 0 : i32
    return %arg0, %c0_i32 : i32, i32
  }
}

</mosaic_0001>

<llo_original>
// kernel: tpu_custom_call.1
$region0: #{tpu_custom_call.1}
  #allocation0 [shape = 'u32[]', space=smem, size = 0x4, offset = 0x4, fixed_abs, tag = 'smem constant byte address 0x4 - core index']
  #allocation1 [shape = 'u32[72,128]{1,0:T(1,128)}', space=vmem, size = 0x9000, scoped, tag = 'internal scratch']
  %s0 = inlined_call_operand.hbm [shape: f32[16,128], index: 0, kind: input, shape index: {}]
  %s1 = inlined_call_operand.hbm [shape: f32[1,128], index: 1, kind: input, shape index: {}]
  %s2 = inlined_call_operand.vmem [shape: f32[1,128], index: 2, kind: input, shape index: {}]
  %s3 = inlined_call_operand.hbm [shape: f32[128,128], index: 3, kind: input, shape index: {}]
  %s4 = inlined_call_operand.vmem [shape: f32[1,128], index: 4, kind: input, shape index: {}]
  %s5 = inlined_call_operand.hbm [shape: f32[16,128], index: 5, kind: output, shape index: {}]
  %s6 = sld [smem:[#allocation0]]
  $region42: #{tpu_custom_call.1} parent=0
    _
  %s8 = ssub.s32 1, %s6
  %s9 = scalar_select 0, %s8, %s6
  $region1: #{tpu_custom_call.1} parent=0
    #allocation2 [shape = 'u8[8192]{0}', space=vmem, size = 0x2000, scoped, tag = 'input window, operand 0, single buffered']
    #allocation3 [shape = 's32[1]{0}', space=sflag, size = 0x4, scoped, tag = 'scoped memory for tpu_custom_call.1']
    #allocation4 [shape = 's32[1]{0}', space=sflag, size = 0x4, scoped, tag = 'scoped memory for tpu_custom_call.1']
    #allocation5 [shape = 'u8[512]{0}', space=vmem, size = 0x400, scoped, tag = 'input window, operand 1, single buffered']
    #allocation6 [shape = 's32[1]{0}', space=sflag, size = 0x4, scoped, tag = 'scoped memory for tpu_custom_call.1']
    #allocation7 [shape = 'u8[65536]{0}', space=vmem, size = 0x10000, scoped, tag = 'input window, operand 3, single buffered']
    #allocation8 [shape = 'u8[8192]{0}', space=vmem, size = 0x2000, scoped, tag = 'output window, operand 0, single buffered']
    %10 = vsyncpa [#allocation3], 0
    %11 = vsyncpa [#allocation6], 0
    %12 = vsyncpa [#allocation4], 0
    // Predicated region
    $region2: #{tpu_custom_call.1} parent=1 // pred_check
      _
    $region3: #{tpu_custom_call.1} parent=1 // pred_check_branch
      %14 = sbr.rel (0) target = $region5
    $region4: #{tpu_custom_call.1} parent=1 // pred_region
      %16 = vsyncadd [#allocation3], 0
      %s17 = sshll.u32 %s0, 4
      %s18 = int_to_ptr.hbm [resolvable:$true] %s17
      %s19 = sshll.u32 [#allocation2], 4
      %s20 = int_to_ptr.vmem [resolvable:$true] %s19
      %25 = dma.hbm_to_vmem [thread:$0]  %s18, 256, %s20, [#allocation3], 128, 128, 8
    $region5: #{tpu_custom_call.1} parent=1 // pred_fallthru
      _
    // Predicated region
    $region6: #{tpu_custom_call.1} parent=1 // pred_check
      _
    $region7: #{tpu_custom_call.1} parent=1 // pred_check_branch
      %27 = sbr.rel (0) target = $region9
    $region8: #{tpu_custom_call.1} parent=1 // pred_region
      %29 = vsyncadd [#allocation6], 0
      %s31 = sshll.u32 %s1, 4
      %s32 = int_to_ptr.hbm [resolvable:$true] %s31
      %s33 = sshll.u32 [#allocation5], 4
      %s34 = int_to_ptr.vmem [resolvable:$true] %s33
      %36 = dma.hbm_to_vmem [thread:$0]  %s32, 16, %s34, [#allocation6]
    $region9: #{tpu_custom_call.1} parent=1 // pred_fallthru
      _
    // Predicated region
    $region10: #{tpu_custom_call.1} parent=1 // pred_check
      _
    $region11: #{tpu_custom_call.1} parent=1 // pred_check_branch
      %38 = sbr.rel (0) target = $region13
    $region12: #{tpu_custom_call.1} parent=1 // pred_region
      _
    $region13: #{tpu_custom_call.1} parent=1 // pred_fallthru
      _
    // Predicated region
    $region14: #{tpu_custom_call.1} parent=1 // pred_check
      _
    $region15: #{tpu_custom_call.1} parent=1 // pred_check_branch
      %40 = sbr.rel (0) target = $region17
    $region16: #{tpu_custom_call.1} parent=1 // pred_region
      %42 = vsyncadd [#allocation6], 0
      %s43 = sshll.u32 %s3, 4
      %s44 = int_to_ptr.hbm [resolvable:$true] %s43
      %s45 = sshll.u32 [#allocation7], 4
      %s46 = int_to_ptr.vmem [resolvable:$true] %s45
      %51 = dma.hbm_to_vmem [thread:$0]  %s44, 2048, %s46, [#allocation6], 128, 128, 8
    $region17: #{tpu_custom_call.1} parent=1 // pred_fallthru
      _
    // Predicated region
    $region18: #{tpu_custom_call.1} parent=1 // pred_check
      _
    $region19: #{tpu_custom_call.1} parent=1 // pred_check_branch
      %53 = sbr.rel (0) target = $region21
    $region20: #{tpu_custom_call.1} parent=1 // pred_region
      _
    $region21: #{tpu_custom_call.1} parent=1 // pred_fallthru
      _
    // Predicated region
    $region22: #{tpu_custom_call.1} parent=1 // pred_check
      _
    $region23: #{tpu_custom_call.1} parent=1 // pred_check_branch
      %55 = sbr.rel (0) target = $region25
    $region24: #{tpu_custom_call.1} parent=1 // pred_region
      %57 = dma.done [#allocation3], 256
    $region25: #{tpu_custom_call.1} parent=1 // pred_fallthru
      _
    // Predicated region
    $region26: #{tpu_custom_call.1} parent=1 // pred_check
      _
    $region27: #{tpu_custom_call.1} parent=1 // pred_check_branch
      %59 = sbr.rel (0) target = $region29
    $region28: #{tpu_custom_call.1} parent=1 // pred_region
      %61 = dma.done [#allocation6], 16
    $region29: #{tpu_custom_call.1} parent=1 // pred_fallthru
      _
    // Predicated region
    $region30: #{tpu_custom_call.1} parent=1 // pred_check
      _
    $region31: #{tpu_custom_call.1} parent=1 // pred_check_branch
      %63 = sbr.rel (0) target = $region33
    $region32: #{tpu_custom_call.1} parent=1 // pred_region
      %65 = dma.done [#allocation6], 2048
    $region33: #{tpu_custom_call.1} parent=1 // pred_fallthru
      _
    %v66 = vld [vmem:[#allocation2] sm:$0xff]
    %v67 = vld [vmem:[#allocation2 + $0x8] sm:$0xff]
    %68 = vadd.xlane.f32.xlu0 %v66
    %v69 = vpop.xlane.xlu0 %68
    %70 = vadd.xlane.f32.xlu0 %v67
    %v71 = vpop.xlane.xlu0 %70
    %v72 = vmul.f32 %v69, 0.03125
    %v73 = vmul.f32 %v71, 0.03125
    %v74 = vmul.f32 %v66, %v66
    %v75 = vmul.f32 %v67, %v67
    %76 = vadd.xlane.f32.xlu0 %v74
    %v77 = vpop.xlane.xlu0 %76
    %78 = vadd.xlane.f32.xlu0 %v75
    %v79 = vpop.xlane.xlu0 %78
    %v80 = vmul.f32 %v77, 0.03125
    %v81 = vmul.f32 %v79, 0.03125
    %v82 = vmul.f32 %v72, %v72
    %v83 = vmul.f32 %v73, %v73
    %v84 = vsub.f32 %v80, %v82
    %v85 = vsub.f32 %v81, %v83
    %v86 = vsub.f32 %v66, %v72
    %v87 = vsub.f32 %v67, %v73
    %v88 = vadd.f32 %v84, 1e-05
    %v89 = vadd.f32 %v85, 1e-05
    %v90 = vrsqrt.pop %v88
    %v91 = vmul.f32 %v90, %v88
    %v92 = vmul.f32 %v91, %v90
    %v93 = vmul.f32 0.5, %v92
    %v94 = vsub.f32 1.5, %v93
    %v95 = vmul.f32 %v90, %v94
    %vm96 = vweird.f32 %v88
    %vm97 = vweird.f32 %v90
    %vm98 = vmor %vm96, %vm97
    %v99 = vsel %vm98, %v90, %v95
    %v100 = vrsqrt.pop %v89
    %v101 = vmul.f32 %v100, %v89
    %v102 = vmul.f32 %v101, %v100
    %v103 = vmul.f32 0.5, %v102
    %v104 = vsub.f32 1.5, %v103
    %v105 = vmul.f32 %v100, %v104
    %vm106 = vweird.f32 %v89
    %vm107 = vweird.f32 %v100
    %vm108 = vmor %vm106, %vm107
    %v109 = vsel %vm108, %v100, %v105
    %v110 = vmul.f32 %v86, %v99
    %v111 = vmul.f32 %v87, %v109
    %v112 = vld [vmem:[#allocation5] sm:$0x1]
    %v114 = vperm.slane %v112, 0
    %v116 = vmul.f32 %v110, %v114
    %v117 = vmul.f32 %v111, %v114
    %v118 = vld [vmem:[%s2] sm:$0x1]
    %v120 = vperm.slane %v118, 0
    %v122 = vadd.f32 %v116, %v120
    %v123 = vadd.f32 %v117, %v120
    %v124 = vld [vmem:[#allocation7] sm:$0xff]
    %v125 = vld [vmem:[#allocation7 + $0x8] sm:$0xff]
    %v126 = vld [vmem:[#allocation7 + $0x10] sm:$0xff]
    %v127 = vld [vmem:[#allocation7 + $0x18] sm:$0xff]
    %v128 = vld [vmem:[#allocation7 + $0x20] sm:$0xff]
    %v129 = vld [vmem:[#allocation7 + $0x28] sm:$0xff]
    %v130 = vld [vmem:[#allocation7 + $0x30] sm:$0xff]
    %v131 = vld [vmem:[#allocation7 + $0x38] sm:$0xff]
    %v132 = vld [vmem:[#allocation7 + $0x40] sm:$0xff]
    %v133 = vld [vmem:[#allocation7 + $0x48] sm:$0xff]
    %v134 = vld [vmem:[#allocation7 + $0x50] sm:$0xff]
    %v135 = vld [vmem:[#allocation7 + $0x58] sm:$0xff]
    %v136 = vld [vmem:[#allocation7 + $0x60] sm:$0xff]
    %v137 = vld [vmem:[#allocation7 + $0x68] sm:$0xff]
    %v138 = vld [vmem:[#allocation7 + $0x70] sm:$0xff]
    %v139 = vld [vmem:[#allocation7 + $0x78] sm:$0xff]
    %v140 = vld [vmem:[%s4] sm:$0x1]
    %v142 = vperm.slane %v140, 0
    %144 = vmatpush.msra.mxu0 %v139
    %145 = vmatpush.msra.mxu0 %v138
    %146 = vmatpush.msra.mxu0 %v137
    %147 = vmatpush.msra.mxu0 %v136
    %148 = vmatpush.msra.mxu0 %v135
    %149 = vmatpush.msra.mxu0 %v134
    %150 = vmatpush.msra.mxu0 %v133
    %151 = vmatpush.msra.mxu0 %v132
    %152 = vmatpush.msra.mxu0 %v131
    %153 = vmatpush.msra.mxu0 %v130
    %154 = vmatpush.msra.mxu0 %v129
    %155 = vmatpush.msra.mxu0 %v128
    %156 = vmatpush.msra.mxu0 %v127
    %157 = vmatpush.msra.mxu0 %v126
    %158 = vmatpush.msra.mxu0 %v125
    %159 = vmatpush.msra.mxu0 %v124
    %160 = vmatmul.f32.gmra.mxu0 %v122
    %v161 = vpop.f32.mrf.mxu0
    %v162 = vadd.f32 %v142, %v161
    %163 = vmatmul.f32.gmra.mxu0 %v123
    %v164 = vpop.f32.mrf.mxu0
    %v165 = vadd.f32 %v142, %v164
    %166 = vdwg.mxu0
    %167 = vst [vmem:[#allocation8] sm:$0xff] %v162
    %168 = vst [vmem:[#allocation8 + $0x8] sm:$0xff] %v165
    // Predicated region
    $region34: #{tpu_custom_call.1} parent=1 // pred_check
      _
    $region35: #{tpu_custom_call.1} parent=1 // pred_check_branch
      %170 = sbr.rel (0) target = $region37
    $region36: #{tpu_custom_call.1} parent=1 // pred_region
      %172 = vsyncadd [#allocation4], 0
      %s173 = sshll.u32 [#allocation8], 4
      %s174 = int_to_ptr.vmem [resolvable:$true] %s173
      %s175 = sshll.u32 %s5, 4
      %s176 = int_to_ptr.hbm [resolvable:$true] %s175
      %181 = dma.vmem_to_hbm [thread:$0]  %s174, 256, %s176, [#allocation4], 128, 128, 8
    $region37: #{tpu_custom_call.1} parent=1 // pred_fallthru
      _
    // Predicated region
    $region38: #{tpu_custom_call.1} parent=1 // pred_check
      _
    $region39: #{tpu_custom_call.1} parent=1 // pred_check_branch
      %183 = sbr.rel (0) target = $region41
    $region40: #{tpu_custom_call.1} parent=1 // pred_region
      %185 = dma.done [#allocation4], 256
    $region41: #{tpu_custom_call.1} parent=1 // pred_fallthru
      _
    %186 = vsyncpa [#allocation3], 1
    %187 = vsyncpa [#allocation6], 1
    %188 = vsyncpa [#allocation4], 1

</llo_original>
